<compile_context>
chip_gen: v7x
topology: tpu7x:2x2x1
jax: 0.10.0
libtpu: 0.0.40
codegen_flags: <defaults>
</compile_context>

<pallas_src>
import functools

import jax
import jax.numpy as jnp
from jax import lax
from jax.experimental import pallas as pl
from jax.experimental.pallas import tpu as pltpu


def _round_up(v, m):
    return (v + m - 1) // m * m


def _vmem_limit_bytes():
    # Generation-aware VMEM budget: leave headroom on 64 MiB-per-core parts (v7x),
    # allow bigger fused slabs on 128 MiB parts (v5e/v6e).
    try:
        cap = pltpu.get_tpu_info().vmem_capacity_bytes
    except Exception:
        cap = 64 * 1024 * 1024
    return (40 if cap <= 64 * 1024 * 1024 else 100) * 1024 * 1024


# ------------------------------- Pallas kernel -------------------------------

def _depthconv1d_kernel(*refs, has_skip, kernel_size, dilation, pad,
                        L, L_out, N, S, Cin, eps):
    if has_skip:
        (x_ref, prelu_ref, w1_ref, pcv_ref, dw_ref, wout_ref, bout_ref,
         res_ref, skip_ref, pad_scr) = refs
    else:
        (x_ref, prelu_ref, w1_ref, pcv_ref, dw_ref, wout_ref, bout_ref,
         res_ref, pad_scr) = refs
        skip_ref = None

    x = x_ref[0]                                   # (Cin, N) bf16, L lane-padded to N
    pcv = pcv_ref[...]                             # (Chid, 4) f32 packed per-channel vecs
    b1, g1, gb1, db = pcv[:, 0:1], pcv[:, 1:2], pcv[:, 2:3], pcv[:, 3:4]
    a1 = prelu_ref[0]                              # PReLU slopes (SMEM scalars)
    a2 = prelu_ref[1]
    Chid = pcv.shape[0]

    # ---- stage 1: 1x1 conv (bf16 MXU, f32 acc) + PReLU + GroupNorm(1, Chid) ----
    h = jnp.dot(w1_ref[...], x, preferred_element_type=jnp.float32) + b1
    h = jnp.where(h >= 0.0, h, a1 * h)

    if L != N:                                     # mask lane-padding out of the stats
        in_mask = lax.broadcasted_iota(jnp.int32, (1, N), 1) < L
        hm = jnp.where(in_mask, h, 0.0)
    else:
        in_mask = None
        hm = h
    inv_cnt1 = 1.0 / (Chid * L)
    m1 = jnp.sum(hm, keepdims=True) * inv_cnt1
    v1 = jnp.maximum(jnp.sum(hm * hm, keepdims=True) * inv_cnt1 - m1 * m1, 0.0)
    h = (h - m1) * lax.rsqrt(v1 + eps) * g1 + gb1
    if in_mask is not None:
        # padded lanes must read as zero in the depthwise conv input
        h = jnp.where(in_mask, h, 0.0)

    # ---- stage 2: depthwise dilated conv via zero-edged VMEM scratch ----
    # Only the edge columns are zeroed (interior is fully rewritten each step); they are
    # re-zeroed every step because a "parallel" grid may never run program_id == 0 on the
    # second TensorCore.
    if pad > 0:
        pad_scr[:, :pad] = jnp.zeros((Chid, pad), jnp.float32)
    if S > pad + N:
        pad_scr[:, pad + N:] = jnp.zeros((Chid, S - pad - N), jnp.float32)
    pad_scr[:, pad:pad + N] = h

    dw = dw_ref[...]                               # (Chid, K) f32 (VPU path, keep f32)
    acc = dw[:, 0:1] * pad_scr[:, 0:N]
    for k in range(1, kernel_size):
        off = k * dilation
        acc = acc + dw[:, k:k + 1] * pad_scr[:, off:off + N]
    acc = acc + db
    acc = jnp.where(acc >= 0.0, acc, a2 * acc)     # PReLU2

    if L_out != N:
        out_mask = lax.broadcasted_iota(jnp.int32, (1, N), 1) < L_out
        am = jnp.where(out_mask, acc, 0.0)
    else:
        am = acc
    inv_cnt2 = 1.0 / (Chid * L_out)
    m2 = jnp.sum(am, keepdims=True) * inv_cnt2
    v2 = jnp.maximum(jnp.sum(am * am, keepdims=True) * inv_cnt2 - m2 * m2, 0.0)
    out2 = (acc - m2) * lax.rsqrt(v2 + eps)        # GN2 affine folded into wout/bout

    # ---- outputs: fused residual+skip 1x1 conv (single MXU pass), lane-dense stores ----
    y = jnp.dot(wout_ref[...], out2.astype(jnp.bfloat16),
                preferred_element_type=jnp.float32) + bout_ref[...]
    res_ref[0] = y[:Cin].astype(res_ref.dtype)
    if has_skip:
        skip_ref[0] = y[Cin:].astype(skip_ref.dtype)


# --------------------------------- wrapper ------------------------------------

def depthconv1d_forward(params, x, *, kernel_size, dilation=1, padding=0,
                        skip=True, causal=False):
    """x: [B, input_channel, L] -> (residual, skip) each [B, input_channel, L_out]."""
    if causal:
        # TODO(synk): causal path (cLN cumulative layer norm + right trim) not implemented.
        raise NotImplementedError("causal DepthConv1d (cLN) not implemented")

    B, Cin, L = x.shape
    Chid = params["conv1d_w"].shape[0]
    K = kernel_size
    L_out = L + 2 * padding - dilation * (K - 1)
    assert L_out >= 1, "invalid kernel/dilation/padding combination"

    # lane-dense padded lengths (outputs cropped back after the call)
    N = _round_up(max(L, L_out), 128)
    S = max(padding + N, N + dilation * (K - 1))   # padded-scratch length

    f32 = jnp.float32
    bf16 = jnp.bfloat16

    # ---- host-side parameter prep: pack / fold / cast once ----
    x_p = x if N == L else jnp.pad(x, ((0, 0), (0, 0), (0, N - L)))
    x_p = x_p.astype(bf16)

    w1 = params["conv1d_w"].astype(bf16)                               # (Chid, Cin)
    pcv = jnp.stack([params["conv1d_b"], params["norm1_w"],
                     params["norm1_b"], params["dconv_b"]], axis=1).astype(f32)  # (Chid, 4)
    dw = params["dconv_w"].astype(f32)                                 # (Chid, K)
    prelu = jnp.concatenate([params["prelu1"].reshape(1),
                             params["prelu2"].reshape(1)]).astype(f32)  # (2,) -> SMEM

    # fold GroupNorm-2 affine into the output 1x1 weights (exact algebraic rewrite)
    g2, gb2 = params["norm2_w"], params["norm2_b"]
    wr = params["res_w"] * g2[None, :]
    br = params["res_b"] + params["res_w"] @ gb2
    if skip:
        ws = params["skip_w"] * g2[None, :]
        bs = params["skip_b"] + params["skip_w"] @ gb2
        wout = jnp.concatenate([wr, ws], axis=0)
        bout = jnp.concatenate([br, bs], axis=0)
    else:
        wout, bout = wr, br
    Cout2 = wout.shape[0]
    wout = wout.astype(bf16)                                           # (Cout2, Chid)
    bout = bout.reshape(Cout2, 1).astype(f32)

    kernel = functools.partial(
        _depthconv1d_kernel, has_skip=skip, kernel_size=K, dilation=dilation,
        pad=padding, L=L, L_out=L_out, N=N, S=S, Cin=Cin, eps=1e-8)

    def full(shape):
        n = len(shape)
        return pl.BlockSpec(shape, lambda b, _n=n: (0,) * _n)

    in_specs = [
        pl.BlockSpec((1, Cin, N), lambda b: (b, 0, 0)),                # x
        pl.BlockSpec(memory_space=pltpu.MemorySpace.SMEM),             # PReLU slopes
        full((Chid, Cin)),                                             # w1 (bf16)
        full((Chid, 4)),                                               # packed per-channel
        full((Chid, K)),                                               # depthwise weights
        full((Cout2, Chid)),                                           # fused res+skip W
        full((Cout2, 1)),                                              # fused res+skip b
    ]
    inputs = [x_p, prelu, w1, pcv, dw, wout, bout]

    out_spec = pl.BlockSpec((1, Cin, N), lambda b: (b, 0, 0))
    if skip:
        out_shape = (jax.ShapeDtypeStruct((B, Cin, N), f32),
                     jax.ShapeDtypeStruct((B, Cin, N), f32))
        out_specs = (out_spec, out_spec)
    else:
        out_shape = jax.ShapeDtypeStruct((B, Cin, N), f32)
        out_specs = out_spec

    out = pl.pallas_call(
        kernel,
        out_shape=out_shape,
        grid=(B,),
        in_specs=in_specs,
        out_specs=out_specs,
        scratch_shapes=[pltpu.VMEM((Chid, S), f32)],
        compiler_params=pltpu.CompilerParams(
            dimension_semantics=("parallel",),
            vmem_limit_bytes=_vmem_limit_bytes()),
    )(*inputs)

    if skip:
        res, sk = out
        return res[:, :, :L_out], sk[:, :, :L_out]
    return out[:, :, :L_out]


# ---------------------------- pure-JAX reference -------------------------------

def _reference_forward(params, x, *, kernel_size, dilation, padding, eps=1e-8):
    def gn(y, w, b):
        m = jnp.mean(y, axis=(1, 2), keepdims=True)
        v = jnp.mean(jnp.square(y - m), axis=(1, 2), keepdims=True)
        return (y - m) / jnp.sqrt(v + eps) * w[None, :, None] + b[None, :, None]

    def prelu(y, a):
        return jnp.where(y >= 0, y, a * y)

    h = jnp.einsum("oc,bcl->bol", params["conv1d_w"], x) + params["conv1d_b"][None, :, None]
    h = gn(prelu(h, params["prelu1"][0]), params["norm1_w"], params["norm1_b"])
    hp = jnp.pad(h, ((0, 0), (0, 0), (padding, padding)))
    L_out = x.shape[2] + 2 * padding - dilation * (kernel_size - 1)
    acc = sum(params["dconv_w"][None, :, k:k + 1] * hp[:, :, k * dilation:k * dilation + L_out]
              for k in range(kernel_size)) + params["dconv_b"][None, :, None]
    out2 = gn(prelu(acc, params["prelu2"][0]), params["norm2_w"], params["norm2_b"])
    res = jnp.einsum("oc,bcl->bol", params["res_w"], out2) + params["res_b"][None, :, None]
    sk = jnp.einsum("oc,bcl->bol", params["skip_w"], out2) + params["skip_b"][None, :, None]
    return res, sk


# ------------------------------------ main -------------------------------------

if __name__ == "__main__":
    # Small shapes consistent with DepthConv1d(input_channel, hidden_channel, kernel, padding, dilation)
    B, Cin, Chid, L = 2, 16, 32, 32
    kernel_size, dilation = 3, 2
    padding = dilation * (kernel_size - 1) // 2       # -> L_out == L

    key = jax.random.PRNGKey(0)
    ks = jax.random.split(key, 9)
    s = 0.1
    params = dict(
        conv1d_w=jax.random.normal(ks[0], (Chid, Cin), jnp.float32) * s,
        conv1d_b=jax.random.normal(ks[1], (Chid,), jnp.float32) * s,
        prelu1=jnp.full((1,), 0.25, jnp.float32),
        norm1_w=jnp.ones((Chid,), jnp.float32),
        norm1_b=jnp.zeros((Chid,), jnp.float32),
        dconv_w=jax.random.normal(ks[2], (Chid, kernel_size), jnp.float32) * s,
        dconv_b=jax.random.normal(ks[3], (Chid,), jnp.float32) * s,
        prelu2=jnp.full((1,), 0.25, jnp.float32),
        norm2_w=jnp.ones((Chid,), jnp.float32),
        norm2_b=jnp.zeros((Chid,), jnp.float32),
        res_w=jax.random.normal(ks[4], (Cin, Chid), jnp.float32) * s,
        res_b=jax.random.normal(ks[5], (Cin,), jnp.float32) * s,
        skip_w=jax.random.normal(ks[6], (Cin, Chid), jnp.float32) * s,
        skip_b=jax.random.normal(ks[7], (Cin,), jnp.float32) * s,
    )
    x = jax.random.normal(ks[8], (B, Cin, L), jnp.float32)

    fwd = jax.jit(functools.partial(depthconv1d_forward, kernel_size=kernel_size,
                                    dilation=dilation, padding=padding, skip=True))
    res, skip_out = fwd(params, x)
    jax.block_until_ready((res, skip_out))

    ref_res, ref_skip = _reference_forward(params, x, kernel_size=kernel_size,
                                           dilation=dilation, padding=padding)
    assert res.shape == (B, Cin, L) and skip_out.shape == (B, Cin, L)
    assert bool(jnp.all(jnp.isfinite(res))) and bool(jnp.all(jnp.isfinite(skip_out)))
    # bf16 MXU operands (f32 accumulation / f32 GroupNorm stats) -> relaxed tolerance vs f32 ref.
    assert bool(jnp.allclose(res, ref_res, atol=3e-2, rtol=3e-2))
    assert bool(jnp.allclose(skip_out, ref_skip, atol=3e-2, rtol=3e-2))
    print("KERNEL_OK")
</pallas_src>

<mosaic_0001>
module attributes {stable_mosaic.version = 11 : i64} {
  func.func @_depthconv1d_kernel(%arg0: i32, %arg1: memref<1x16x128xbf16, #tpu.memory_space<vmem>>, %arg2: memref<2xf32, #tpu.memory_space<smem>>, %arg3: memref<32x16xbf16, #tpu.memory_space<vmem>>, %arg4: memref<32x4xf32, #tpu.memory_space<vmem>>, %arg5: memref<32x3xf32, #tpu.memory_space<vmem>>, %arg6: memref<32x32xbf16, #tpu.memory_space<vmem>>, %arg7: memref<32x1xf32, #tpu.memory_space<vmem>>, %arg8: memref<1x16x128xf32, #tpu.memory_space<vmem>>, %arg9: memref<1x16x128xf32, #tpu.memory_space<vmem>>, %arg10: memref<32x132xf32, #tpu.memory_space<vmem>>) attributes {dimension_semantics = [#tpu.dimension_semantics<parallel>], iteration_bounds = array<i64: 2>, scalar_prefetch = 0 : i64, scratch_operands = 1 : i64, tpu.core_type = #tpu.core_type<tc>, window_params = [{transform_indices = @transform_0, window_bounds = array<i64: 1, 16, 128>}, {transform_indices = @transform_1, window_bounds = array<i64: 2>}, {pipeline_mode = #tpu.pipeline_mode<synchronous>, transform_indices = @transform_2, window_bounds = array<i64: 32, 16>}, {pipeline_mode = #tpu.pipeline_mode<synchronous>, transform_indices = @transform_3, window_bounds = array<i64: 32, 4>}, {pipeline_mode = #tpu.pipeline_mode<synchronous>, transform_indices = @transform_4, window_bounds = array<i64: 32, 3>}, {pipeline_mode = #tpu.pipeline_mode<synchronous>, transform_indices = @transform_5, window_bounds = array<i64: 32, 32>}, {pipeline_mode = #tpu.pipeline_mode<synchronous>, transform_indices = @transform_6, window_bounds = array<i64: 32, 1>}, {transform_indices = @transform_7, window_bounds = array<i64: 1, 16, 128>}, {transform_indices = @transform_8, window_bounds = array<i64: 1, 16, 128>}]} {
    %c0 = arith.constant 0 : index
    %c0_0 = arith.constant 0 : index
    %c0_1 = arith.constant 0 : index
    %0 = vector.load %arg1[%c0, %c0_0, %c0_1] : memref<1x16x128xbf16, #tpu.memory_space<vmem>>, vector<1x16x128xbf16>
    %1 = vector.shape_cast %0 : vector<1x16x128xbf16> to vector<16x128xbf16>
    %c0_2 = arith.constant 0 : index
    %c0_3 = arith.constant 0 : index
    %2 = vector.load %arg4[%c0_2, %c0_3] : memref<32x4xf32, #tpu.memory_space<vmem>>, vector<32x4xf32>
    %3 = vector.extract_strided_slice %2 {offsets = [0, 0], sizes = [32, 1], strides = [1, 1]} : vector<32x4xf32> to vector<32x1xf32>
    %4 = vector.extract_strided_slice %2 {offsets = [0, 1], sizes = [32, 1], strides = [1, 1]} : vector<32x4xf32> to vector<32x1xf32>
    %5 = vector.extract_strided_slice %2 {offsets = [0, 2], sizes = [32, 1], strides = [1, 1]} : vector<32x4xf32> to vector<32x1xf32>
    %6 = vector.extract_strided_slice %2 {offsets = [0, 3], sizes = [32, 1], strides = [1, 1]} : vector<32x4xf32> to vector<32x1xf32>
    %c0_4 = arith.constant 0 : index
    %7 = memref.load %arg2[%c0_4] : memref<2xf32, #tpu.memory_space<smem>>
    %c1 = arith.constant 1 : index
    %8 = memref.load %arg2[%c1] : memref<2xf32, #tpu.memory_space<smem>>
    %c0_5 = arith.constant 0 : index
    %c0_6 = arith.constant 0 : index
    %9 = vector.load %arg3[%c0_5, %c0_6] : memref<32x16xbf16, #tpu.memory_space<vmem>>, vector<32x16xbf16>
    %cst = arith.constant dense<0.000000e+00> : vector<32x128xf32>
    %10 = tpu.matmul %9, %1, %cst {dimension_numbers = #tpu.dot_dimension_numbers<[1], [0], [0], [1], [0, 0, 1, 1], [], []>} : vector<32x16xbf16>, vector<16x128xbf16>, vector<32x128xf32> -> vector<32x128xf32>
    %11 = vector.broadcast %3 : vector<32x1xf32> to vector<32x128xf32>
    %12 = arith.addf %10, %11 : vector<32x128xf32>
    %cst_7 = arith.constant 0.000000e+00 : f32
    %13 = vector.broadcast %cst_7 : f32 to vector<32x128xf32>
    %14 = arith.cmpf oge, %12, %13 : vector<32x128xf32>
    %15 = vector.broadcast %7 : f32 to vector<32x128xf32>
    %16 = arith.mulf %15, %12 : vector<32x128xf32>
    %17 = arith.select %14, %12, %16 : vector<32x128xi1>, vector<32x128xf32>
    %18 = tpu.iota {dimensions = array<i32: 1>} : vector<1x128xi32>
    %c32_i32 = arith.constant 32 : i32
    %19 = vector.broadcast %c32_i32 : i32 to vector<1x128xi32>
    %20 = arith.cmpi slt, %18, %19 : vector<1x128xi32>
    %cst_8 = arith.constant 0.000000e+00 : f32
    %21 = vector.shape_cast %20 : vector<1x128xi1> to vector<1x128xi1>
    %22 = vector.broadcast %21 : vector<1x128xi1> to vector<32x128xi1>
    %23 = vector.broadcast %cst_8 : f32 to vector<32x128xf32>
    %24 = arith.select %22, %17, %23 : vector<32x128xi1>, vector<32x128xf32>
    %25 = vector.shape_cast %24 : vector<32x128xf32> to vector<1x32x128xf32>
    %cst_9 = arith.constant dense<0.000000e+00> : vector<1xf32>
    %26 = vector.multi_reduction <add>, %25, %cst_9 [1, 2] : vector<1x32x128xf32> to vector<1xf32>
    %27 = vector.shape_cast %26 : vector<1xf32> to vector<1x1x1xf32>
    %28 = vector.extract %27[0, 0, 0] : f32 from vector<1x1x1xf32>
    %29 = vector.broadcast %28 : f32 to vector<1x1xf32>
    %cst_10 = arith.constant 9.765625E-4 : f32
    %30 = vector.broadcast %cst_10 : f32 to vector<1x1xf32>
    %31 = arith.mulf %29, %30 : vector<1x1xf32>
    %32 = arith.mulf %24, %24 : vector<32x128xf32>
    %33 = vector.shape_cast %32 : vector<32x128xf32> to vector<1x32x128xf32>
    %cst_11 = arith.constant dense<0.000000e+00> : vector<1xf32>
    %34 = vector.multi_reduction <add>, %33, %cst_11 [1, 2] : vector<1x32x128xf32> to vector<1xf32>
    %35 = vector.shape_cast %34 : vector<1xf32> to vector<1x1x1xf32>
    %36 = vector.extract %35[0, 0, 0] : f32 from vector<1x1x1xf32>
    %37 = vector.broadcast %36 : f32 to vector<1x1xf32>
    %cst_12 = arith.constant 9.765625E-4 : f32
    %38 = vector.broadcast %cst_12 : f32 to vector<1x1xf32>
    %39 = arith.mulf %37, %38 : vector<1x1xf32>
    %40 = arith.mulf %31, %31 : vector<1x1xf32>
    %41 = arith.subf %39, %40 : vector<1x1xf32>
    %cst_13 = arith.constant 0.000000e+00 : f32
    %42 = vector.broadcast %cst_13 : f32 to vector<1x1xf32>
    %43 = arith.maximumf %41, %42 : vector<1x1xf32>
    %44 = vector.broadcast %31 : vector<1x1xf32> to vector<32x128xf32>
    %45 = arith.subf %17, %44 : vector<32x128xf32>
    %cst_14 = arith.constant 9.99999993E-9 : f32
    %46 = vector.broadcast %cst_14 : f32 to vector<1x1xf32>
    %47 = arith.addf %43, %46 : vector<1x1xf32>
    %48 = math.rsqrt %47 : vector<1x1xf32>
    %49 = vector.broadcast %48 : vector<1x1xf32> to vector<32x128xf32>
    %50 = arith.mulf %45, %49 : vector<32x128xf32>
    %51 = vector.broadcast %4 : vector<32x1xf32> to vector<32x128xf32>
    %52 = arith.mulf %50, %51 : vector<32x128xf32>
    %53 = vector.broadcast %5 : vector<32x1xf32> to vector<32x128xf32>
    %54 = arith.addf %52, %53 : vector<32x128xf32>
    %cst_15 = arith.constant 0.000000e+00 : f32
    %55 = vector.shape_cast %20 : vector<1x128xi1> to vector<1x128xi1>
    %56 = vector.broadcast %55 : vector<1x128xi1> to vector<32x128xi1>
    %57 = vector.broadcast %cst_15 : f32 to vector<32x128xf32>
    %58 = arith.select %56, %54, %57 : vector<32x128xi1>, vector<32x128xf32>
    %cst_16 = arith.constant 0.000000e+00 : f32
    %59 = vector.broadcast %cst_16 : f32 to vector<32x2xf32>
    %c0_17 = arith.constant 0 : index
    %c0_18 = arith.constant 0 : index
    %60 = vector.load %arg10[%c0_17, %c0_18] : memref<32x132xf32, #tpu.memory_space<vmem>>, vector<32x2xf32>
    tpu.vector_store %arg10[%c0_17, %c0_18], %59 {strides = array<i32>} : memref<32x132xf32, #tpu.memory_space<vmem>>, vector<32x2xf32>,
    %cst_19 = arith.constant 0.000000e+00 : f32
    %61 = vector.broadcast %cst_19 : f32 to vector<32x2xf32>
    %c0_20 = arith.constant 0 : index
    %c130 = arith.constant 130 : index
    %62 = vector.load %arg10[%c0_20, %c130] : memref<32x132xf32, #tpu.memory_space<vmem>>, vector<32x2xf32>
    tpu.vector_store %arg10[%c0_20, %c130], %61 {strides = array<i32>} : memref<32x132xf32, #tpu.memory_space<vmem>>, vector<32x2xf32>,
    %c0_21 = arith.constant 0 : index
    %c2 = arith.constant 2 : index
    %63 = vector.load %arg10[%c0_21, %c2] : memref<32x132xf32, #tpu.memory_space<vmem>>, vector<32x128xf32>
    tpu.vector_store %arg10[%c0_21, %c2], %58 {strides = array<i32>} : memref<32x132xf32, #tpu.memory_space<vmem>>, vector<32x128xf32>,
    %c0_22 = arith.constant 0 : index
    %c0_23 = arith.constant 0 : index
    %64 = vector.load %arg5[%c0_22, %c0_23] : memref<32x3xf32, #tpu.memory_space<vmem>>, vector<32x3xf32>
    %65 = vector.extract_strided_slice %64 {offsets = [0, 0], sizes = [32, 1], strides = [1, 1]} : vector<32x3xf32> to vector<32x1xf32>
    %c0_24 = arith.constant 0 : index
    %c0_25 = arith.constant 0 : index
    %66 = vector.load %arg10[%c0_24, %c0_25] : memref<32x132xf32, #tpu.memory_space<vmem>>, vector<32x128xf32>
    %67 = vector.broadcast %65 : vector<32x1xf32> to vector<32x128xf32>
    %68 = arith.mulf %67, %66 : vector<32x128xf32>
    %69 = vector.extract_strided_slice %64 {offsets = [0, 1], sizes = [32, 1], strides = [1, 1]} : vector<32x3xf32> to vector<32x1xf32>
    %c0_26 = arith.constant 0 : index
    %c2_27 = arith.constant 2 : index
    %70 = vector.load %arg10[%c0_26, %c2_27] : memref<32x132xf32, #tpu.memory_space<vmem>>, vector<32x128xf32>
    %71 = vector.broadcast %69 : vector<32x1xf32> to vector<32x128xf32>
    %72 = arith.mulf %71, %70 : vector<32x128xf32>
    %73 = arith.addf %68, %72 : vector<32x128xf32>
    %74 = vector.extract_strided_slice %64 {offsets = [0, 2], sizes = [32, 1], strides = [1, 1]} : vector<32x3xf32> to vector<32x1xf32>
    %c0_28 = arith.constant 0 : index
    %c4 = arith.constant 4 : index
    %75 = vector.load %arg10[%c0_28, %c4] : memref<32x132xf32, #tpu.memory_space<vmem>>, vector<32x128xf32>
    %76 = vector.broadcast %74 : vector<32x1xf32> to vector<32x128xf32>
    %77 = arith.mulf %76, %75 : vector<32x128xf32>
    %78 = arith.addf %73, %77 : vector<32x128xf32>
    %79 = vector.broadcast %6 : vector<32x1xf32> to vector<32x128xf32>
    %80 = arith.addf %78, %79 : vector<32x128xf32>
    %cst_29 = arith.constant 0.000000e+00 : f32
    %81 = vector.broadcast %cst_29 : f32 to vector<32x128xf32>
    %82 = arith.cmpf oge, %80, %81 : vector<32x128xf32>
    %83 = vector.broadcast %8 : f32 to vector<32x128xf32>
    %84 = arith.mulf %83, %80 : vector<32x128xf32>
    %85 = arith.select %82, %80, %84 : vector<32x128xi1>, vector<32x128xf32>
    %86 = tpu.iota {dimensions = array<i32: 1>} : vector<1x128xi32>
    %c32_i32_30 = arith.constant 32 : i32
    %87 = vector.broadcast %c32_i32_30 : i32 to vector<1x128xi32>
    %88 = arith.cmpi slt, %86, %87 : vector<1x128xi32>
    %cst_31 = arith.constant 0.000000e+00 : f32
    %89 = vector.shape_cast %88 : vector<1x128xi1> to vector<1x128xi1>
    %90 = vector.broadcast %89 : vector<1x128xi1> to vector<32x128xi1>
    %91 = vector.broadcast %cst_31 : f32 to vector<32x128xf32>
    %92 = arith.select %90, %85, %91 : vector<32x128xi1>, vector<32x128xf32>
    %93 = vector.shape_cast %92 : vector<32x128xf32> to vector<1x32x128xf32>
    %cst_32 = arith.constant dense<0.000000e+00> : vector<1xf32>
    %94 = vector.multi_reduction <add>, %93, %cst_32 [1, 2] : vector<1x32x128xf32> to vector<1xf32>
    %95 = vector.shape_cast %94 : vector<1xf32> to vector<1x1x1xf32>
    %96 = vector.extract %95[0, 0, 0] : f32 from vector<1x1x1xf32>
    %97 = vector.broadcast %96 : f32 to vector<1x1xf32>
    %cst_33 = arith.constant 9.765625E-4 : f32
    %98 = vector.broadcast %cst_33 : f32 to vector<1x1xf32>
    %99 = arith.mulf %97, %98 : vector<1x1xf32>
    %100 = arith.mulf %92, %92 : vector<32x128xf32>
    %101 = vector.shape_cast %100 : vector<32x128xf32> to vector<1x32x128xf32>
    %cst_34 = arith.constant dense<0.000000e+00> : vector<1xf32>
    %102 = vector.multi_reduction <add>, %101, %cst_34 [1, 2] : vector<1x32x128xf32> to vector<1xf32>
    %103 = vector.shape_cast %102 : vector<1xf32> to vector<1x1x1xf32>
    %104 = vector.extract %103[0, 0, 0] : f32 from vector<1x1x1xf32>
    %105 = vector.broadcast %104 : f32 to vector<1x1xf32>
    %cst_35 = arith.constant 9.765625E-4 : f32
    %106 = vector.broadcast %cst_35 : f32 to vector<1x1xf32>
    %107 = arith.mulf %105, %106 : vector<1x1xf32>
    %108 = arith.mulf %99, %99 : vector<1x1xf32>
    %109 = arith.subf %107, %108 : vector<1x1xf32>
    %cst_36 = arith.constant 0.000000e+00 : f32
    %110 = vector.broadcast %cst_36 : f32 to vector<1x1xf32>
    %111 = arith.maximumf %109, %110 : vector<1x1xf32>
    %112 = vector.broadcast %99 : vector<1x1xf32> to vector<32x128xf32>
    %113 = arith.subf %85, %112 : vector<32x128xf32>
    %cst_37 = arith.constant 9.99999993E-9 : f32
    %114 = vector.broadcast %cst_37 : f32 to vector<1x1xf32>
    %115 = arith.addf %111, %114 : vector<1x1xf32>
    %116 = math.rsqrt %115 : vector<1x1xf32>
    %117 = vector.broadcast %116 : vector<1x1xf32> to vector<32x128xf32>
    %118 = arith.mulf %113, %117 : vector<32x128xf32>
    %c0_38 = arith.constant 0 : index
    %c0_39 = arith.constant 0 : index
    %119 = vector.load %arg6[%c0_38, %c0_39] : memref<32x32xbf16, #tpu.memory_space<vmem>>, vector<32x32xbf16>
    %120 = arith.truncf %118 : vector<32x128xf32> to vector<32x128xbf16>
    %cst_40 = arith.constant dense<0.000000e+00> : vector<32x128xf32>
    %121 = tpu.matmul %119, %120, %cst_40 {dimension_numbers = #tpu.dot_dimension_numbers<[1], [0], [0], [1], [0, 0, 1, 1], [], []>} : vector<32x32xbf16>, vector<32x128xbf16>, vector<32x128xf32> -> vector<32x128xf32>
    %c0_41 = arith.constant 0 : index
    %c0_42 = arith.constant 0 : index
    %122 = vector.load %arg7[%c0_41, %c0_42] : memref<32x1xf32, #tpu.memory_space<vmem>>, vector<32x1xf32>
    %123 = vector.broadcast %122 : vector<32x1xf32> to vector<32x128xf32>
    %124 = arith.addf %121, %123 : vector<32x128xf32>
    %125 = vector.extract_strided_slice %124 {offsets = [0, 0], sizes = [16, 128], strides = [1, 1]} : vector<32x128xf32> to vector<16x128xf32>
    %c0_43 = arith.constant 0 : index
    %c0_44 = arith.constant 0 : index
    %c0_45 = arith.constant 0 : index
    %126 = vector.load %arg8[%c0_43, %c0_44, %c0_45] : memref<1x16x128xf32, #tpu.memory_space<vmem>>, vector<1x16x128xf32>
    %127 = vector.shape_cast %126 : vector<1x16x128xf32> to vector<16x128xf32>
    %128 = vector.shape_cast %125 : vector<16x128xf32> to vector<1x16x128xf32>
    tpu.vector_store %arg8[%c0_43, %c0_44, %c0_45], %128 {strides = array<i32>} : memref<1x16x128xf32, #tpu.memory_space<vmem>>, vector<1x16x128xf32>,
    %129 = vector.extract_strided_slice %124 {offsets = [16, 0], sizes = [16, 128], strides = [1, 1]} : vector<32x128xf32> to vector<16x128xf32>
    %c0_46 = arith.constant 0 : index
    %c0_47 = arith.constant 0 : index
    %c0_48 = arith.constant 0 : index
    %130 = vector.load %arg9[%c0_46, %c0_47, %c0_48] : memref<1x16x128xf32, #tpu.memory_space<vmem>>, vector<1x16x128xf32>
    %131 = vector.shape_cast %130 : vector<1x16x128xf32> to vector<16x128xf32>
    %132 = vector.shape_cast %129 : vector<16x128xf32> to vector<1x16x128xf32>
    tpu.vector_store %arg9[%c0_46, %c0_47, %c0_48], %132 {strides = array<i32>} : memref<1x16x128xf32, #tpu.memory_space<vmem>>, vector<1x16x128xf32>,
    return
  }
  func.func @transform_0(%arg0: i32) -> (i32, i32, i32) {
    %c0_i32 = arith.constant 0 : i32
    %c0_i32_0 = arith.constant 0 : i32
    %c0_i32_1 = arith.constant 0 : i32
    return %arg0, %c0_i32, %c0_i32_0 : i32, i32, i32
  }
  func.func @transform_1(%arg0: i32) -> i32 {
    %c0_i32 = arith.constant 0 : i32
    %c0_i32_0 = arith.constant 0 : i32
    return %c0_i32 : i32
  }
  func.func @transform_2(%arg0: i32) -> (i32, i32) {
    %c0_i32 = arith.constant 0 : i32
    %c0_i32_0 = arith.constant 0 : i32
    %c0_i32_1 = arith.constant 0 : i32
    return %c0_i32, %c0_i32_0 : i32, i32
  }
  func.func @transform_3(%arg0: i32) -> (i32, i32) {
    %c0_i32 = arith.constant 0 : i32
    %c0_i32_0 = arith.constant 0 : i32
    %c0_i32_1 = arith.constant 0 : i32
    return %c0_i32, %c0_i32_0 : i32, i32
  }
  func.func @transform_4(%arg0: i32) -> (i32, i32) {
    %c0_i32 = arith.constant 0 : i32
    %c0_i32_0 = arith.constant 0 : i32
    %c0_i32_1 = arith.constant 0 : i32
    return %c0_i32, %c0_i32_0 : i32, i32
  }
  func.func @transform_5(%arg0: i32) -> (i32, i32) {
    %c0_i32 = arith.constant 0 : i32
    %c0_i32_0 = arith.constant 0 : i32
    %c0_i32_1 = arith.constant 0 : i32
    return %c0_i32, %c0_i32_0 : i32, i32
  }
  func.func @transform_6(%arg0: i32) -> (i32, i32) {
    %c0_i32 = arith.constant 0 : i32
    %c0_i32_0 = arith.constant 0 : i32
    %c0_i32_1 = arith.constant 0 : i32
    return %c0_i32, %c0_i32_0 : i32, i32
  }
  func.func @transform_7(%arg0: i32) -> (i32, i32, i32) {
    %c0_i32 = arith.constant 0 : i32
    %c0_i32_0 = arith.constant 0 : i32
    %c0_i32_1 = arith.constant 0 : i32
    return %arg0, %c0_i32, %c0_i32_0 : i32, i32, i32
  }
  func.func @transform_8(%arg0: i32) -> (i32, i32, i32) {
    %c0_i32 = arith.constant 0 : i32
    %c0_i32_0 = arith.constant 0 : i32
    %c0_i32_1 = arith.constant 0 : i32
    return %arg0, %c0_i32, %c0_i32_0 : i32, i32, i32
  }
}

</mosaic_0001>

<llo_original>
// kernel: depthconv1d_forward.1
$region0: #{depthconv1d_forward.1}
  #allocation0 [shape = 'u32[]', space=smem, size = 0x4, offset = 0x4, fixed_abs, tag = 'smem constant byte address 0x4 - core index']
  #allocation1 [shape = 'u32[144,128]{1,0:T(1,128)}', space=vmem, size = 0x12000, scoped, tag = 'internal scratch']
  #allocation2 [shape = 'f32[32,132]{1,0:T(8,128)}', space=vmem, size = 0x8000, scoped, tag = 'scratch operand']
  %s0 = inlined_call_operand.vmem [shape: bf16[2,16,128], index: 0, kind: input, shape index: {}]
  %s1 = inlined_call_operand.vmem [shape: f32[2], index: 1, kind: input, shape index: {}]
  %s2 = inlined_call_operand.vmem [shape: bf16[32,16], index: 2, kind: input, shape index: {}]
  %s3 = inlined_call_operand.vmem [shape: f32[32,4], index: 3, kind: input, shape index: {}]
  %s4 = inlined_call_operand.vmem [shape: f32[32,3], index: 4, kind: input, shape index: {}]
  %s5 = inlined_call_operand.vmem [shape: bf16[32,32], index: 5, kind: input, shape index: {}]
  %s6 = inlined_call_operand.vmem [shape: f32[32,1], index: 6, kind: input, shape index: {}]
  %s7 = inlined_call_operand.hbm [shape: f32[2,16,128], index: 7, kind: output, shape index: {0}]
  %s8 = inlined_call_operand.hbm [shape: f32[2,16,128], index: 8, kind: output, shape index: {1}]
  %9 = xla_tuple %s7, %s8
  %s10 = sld [smem:[#allocation0]]
  $region73: #{depthconv1d_forward.1} parent=0
    _
  %s12 = ssub.s32 1, %s10
  %s13 = scalar_select 0, %s12, %s10
  $region1: #{depthconv1d_forward.1} parent=0
    #allocation3 [shape = 'u8[512]{0}', space=smem, size = 0x200, scoped, tag = 'input window, operand 1, single buffered']
    #allocation4 [shape = 's32[2]{0}', space=sflag, size = 0x8, scoped, tag = 'scoped memory for depthconv1d_forward.1']
    #allocation5 [shape = 's32[2]{0}', space=sflag, size = 0x8, scoped, tag = 'scoped memory for depthconv1d_forward.1']
    #allocation6 [shape = 'u8[16384]{0}', space=vmem, size = 0x4000, scoped, tag = 'output window, operand 0']
    #allocation7 [shape = 'u8[16384]{0}', space=vmem, size = 0x4000, scoped, tag = 'output window, operand 1']
    #allocation8 [shape = 's32[2]{0}', space=sflag, size = 0x8, scoped, tag = 'scoped memory for depthconv1d_forward.1']
    %14 = vsyncpa [#allocation5], 0
    %15 = vsyncpa [#allocation4], 0
    %s16 = scalar_lea.sflag [#allocation4], 1
    %17 = vsyncpa %s16, 0
    %18 = vsyncpa [#allocation8], 0
    %s19 = scalar_lea.sflag [#allocation8], 1
    %20 = vsyncpa %s19, 0
    loop: start=0, step=1, limit=4
    $region2: #{depthconv1d_forward.1} parent=1 // loop_pre_header
      _
    $region3: #{depthconv1d_forward.1} parent=1 // loop_header
      %s22 = sphi 0, %s26
      %p23 = scmp.ge.s32.totalorder %s22, 4
      %s32 = sphi 0, %s34
      %s35 = sphi 0, %s32
      %s36 = sphi 0, %s35
      %s52 = sphi 0, %s36
      %s56 = sphi 0, %s56
      %s58 = sphi 0, %s56
      %s59 = sphi 0, %s58
      %s73 = sphi 0, %s59
      %s77 = sphi 0, %s77
      %s79 = sphi 0, %s77
      %s80 = sphi 0, %s79
      %s94 = sphi 0, %s80
      %s98 = sphi 0, %s98
      %s100 = sphi 0, %s98
      %s101 = sphi 0, %s100
      %s115 = sphi 0, %s101
      %s119 = sphi 0, %s119
      %s121 = sphi 0, %s119
      %s122 = sphi 0, %s121
      %s136 = sphi 0, %s122
      %s140 = sphi 0, %s140
      %s142 = sphi 0, %s140
      %s143 = sphi 0, %s142
      %s157 = sphi 0, %s143
      %s161 = sphi 0, %s161
      %s163 = sphi 0, %s161
      %s164 = sphi 0, %s163
      %s178 = sphi 0, %s164
      %s184 = sphi 0, %s186
      %s187 = sphi 0, %s184
      %s188 = sphi 0, %s187
      %s204 = sphi 0, %s188
      %s210 = sphi 0, %s212
      %s213 = sphi 0, %s210
      %s214 = sphi 0, %s213
      %s230 = sphi 0, %s214
    $region4: #{depthconv1d_forward.1} parent=1 // loop_header_branch
      %25 = sbr.rel (%p23) target = $region8
    $region5: #{depthconv1d_forward.1} parent=1 // loop_body
      %s27 = ssub.s32 %s22, 1
      %s28 = ssub.s32 %s22, 2
      %s29 = sadd.s32 %s22, 1
      %s30 = ssub.s32 %s22, %s29
      %p31 = scmp.eq.s32.totalorder %s30, 0
      %s33 = sadd.s32 %s32, 1
      %s34 = scalar_select %p31, %s32, %s33
      %p37 = pneg %p31
      %p38 = scmp.eq.s32.totalorder %s22, 1
      %p39 = por %p37, %p38
      %p40 = scmp.ne.s32.totalorder %s32, %s35
      %p41 = scmp.eq.s32.totalorder %s22, 0
      %p42 = por %p40, %p41
      %p43 = scmp.ne.s32.totalorder %s32, %s35
      %p44 = scmp.eq.s32.totalorder %s27, 1
      %p45 = por %p43, %p44
      %p46 = scmp.ne.s32.totalorder %s35, %s36
      %p47 = scmp.eq.s32.totalorder %s27, 0
      %p48 = por %p46, %p47
      %p49 = scmp.ne.s32.totalorder %s35, %s36
      %p50 = scmp.eq.s32.totalorder %s28, 1
      %p51 = por %p49, %p50
      %p53 = scmp.ne.s32.totalorder %s36, %s52
      %p54 = scmp.eq.s32.totalorder %s28, 0
      %p55 = por %p53, %p54
      %s57 = sadd.s32 %s56, 1
      %p60 = scmp.eq.s32.totalorder %s22, 1
      %p61 = scmp.ne.s32.totalorder %s56, %s58
      %p62 = scmp.eq.s32.totalorder %s22, 0
      %p63 = por %p61, %p62
      %p64 = scmp.ne.s32.totalorder %s56, %s58
      %p65 = scmp.eq.s32.totalorder %s27, 1
      %p66 = por %p64, %p65
      %p67 = scmp.ne.s32.totalorder %s58, %s59
      %p68 = scmp.eq.s32.totalorder %s27, 0
      %p69 = por %p67, %p68
      %p70 = scmp.ne.s32.totalorder %s58, %s59
      %p71 = scmp.eq.s32.totalorder %s28, 1
      %p72 = por %p70, %p71
      %p74 = scmp.ne.s32.totalorder %s59, %s73
      %p75 = scmp.eq.s32.totalorder %s28, 0
      %p76 = por %p74, %p75
      %s78 = sadd.s32 %s77, 1
      %p81 = scmp.eq.s32.totalorder %s22, 1
      %p82 = scmp.ne.s32.totalorder %s77, %s79
      %p83 = scmp.eq.s32.totalorder %s22, 0
      %p84 = por %p82, %p83
      %p85 = scmp.ne.s32.totalorder %s77, %s79
      %p86 = scmp.eq.s32.totalorder %s27, 1
      %p87 = por %p85, %p86
      %p88 = scmp.ne.s32.totalorder %s79, %s80
      %p89 = scmp.eq.s32.totalorder %s27, 0
      %p90 = por %p88, %p89
      %p91 = scmp.ne.s32.totalorder %s79, %s80
      %p92 = scmp.eq.s32.totalorder %s28, 1
      %p93 = por %p91, %p92
      %p95 = scmp.ne.s32.totalorder %s80, %s94
      %p96 = scmp.eq.s32.totalorder %s28, 0
      %p97 = por %p95, %p96
      %s99 = sadd.s32 %s98, 1
      %p102 = scmp.eq.s32.totalorder %s22, 1
      %p103 = scmp.ne.s32.totalorder %s98, %s100
      %p104 = scmp.eq.s32.totalorder %s22, 0
      %p105 = por %p103, %p104
      %p106 = scmp.ne.s32.totalorder %s98, %s100
      %p107 = scmp.eq.s32.totalorder %s27, 1
      %p108 = por %p106, %p107
      %p109 = scmp.ne.s32.totalorder %s100, %s101
      %p110 = scmp.eq.s32.totalorder %s27, 0
      %p111 = por %p109, %p110
      %p112 = scmp.ne.s32.totalorder %s100, %s101
      %p113 = scmp.eq.s32.totalorder %s28, 1
      %p114 = por %p112, %p113
      %p116 = scmp.ne.s32.totalorder %s101, %s115
      %p117 = scmp.eq.s32.totalorder %s28, 0
      %p118 = por %p116, %p117
      %s120 = sadd.s32 %s119, 1
      %p123 = scmp.eq.s32.totalorder %s22, 1
      %p124 = scmp.ne.s32.totalorder %s119, %s121
      %p125 = scmp.eq.s32.totalorder %s22, 0
      %p126 = por %p124, %p125
      %p127 = scmp.ne.s32.totalorder %s119, %s121
      %p128 = scmp.eq.s32.totalorder %s27, 1
      %p129 = por %p127, %p128
      %p130 = scmp.ne.s32.totalorder %s121, %s122
      %p131 = scmp.eq.s32.totalorder %s27, 0
      %p132 = por %p130, %p131
      %p133 = scmp.ne.s32.totalorder %s121, %s122
      %p134 = scmp.eq.s32.totalorder %s28, 1
      %p135 = por %p133, %p134
      %p137 = scmp.ne.s32.totalorder %s122, %s136
      %p138 = scmp.eq.s32.totalorder %s28, 0
      %p139 = por %p137, %p138
      %s141 = sadd.s32 %s140, 1
      %p144 = scmp.eq.s32.totalorder %s22, 1
      %p145 = scmp.ne.s32.totalorder %s140, %s142
      %p146 = scmp.eq.s32.totalorder %s22, 0
      %p147 = por %p145, %p146
      %p148 = scmp.ne.s32.totalorder %s140, %s142
      %p149 = scmp.eq.s32.totalorder %s27, 1
      %p150 = por %p148, %p149
      %p151 = scmp.ne.s32.totalorder %s142, %s143
      %p152 = scmp.eq.s32.totalorder %s27, 0
      %p153 = por %p151, %p152
      %p154 = scmp.ne.s32.totalorder %s142, %s143
      %p155 = scmp.eq.s32.totalorder %s28, 1
      %p156 = por %p154, %p155
      %p158 = scmp.ne.s32.totalorder %s143, %s157
      %p159 = scmp.eq.s32.totalorder %s28, 0
      %p160 = por %p158, %p159
      %s162 = sadd.s32 %s161, 1
      %p165 = scmp.eq.s32.totalorder %s22, 1
      %p166 = scmp.ne.s32.totalorder %s161, %s163
      %p167 = scmp.eq.s32.totalorder %s22, 0
      %p168 = por %p166, %p167
      %p169 = scmp.ne.s32.totalorder %s161, %s163
      %p170 = scmp.eq.s32.totalorder %s27, 1
      %p171 = por %p169, %p170
      %p172 = scmp.ne.s32.totalorder %s163, %s164
      %p173 = scmp.eq.s32.totalorder %s27, 0
      %p174 = por %p172, %p173
      %p175 = scmp.ne.s32.totalorder %s163, %s164
      %p176 = scmp.eq.s32.totalorder %s28, 1
      %p177 = por %p175, %p176
      %p179 = scmp.ne.s32.totalorder %s164, %s178
      %p180 = scmp.eq.s32.totalorder %s28, 0
      %p181 = por %p179, %p180
      %s182 = ssub.s32 %s22, %s29
      %p183 = scmp.eq.s32.totalorder %s182, 0
      %s185 = sadd.s32 %s184, 1
      %s186 = scalar_select %p183, %s184, %s185
      %p189 = pneg %p183
      %p190 = scmp.eq.s32.totalorder %s22, 1
      %p191 = por %p189, %p190
      %p192 = scmp.ne.s32.totalorder %s184, %s187
      %p193 = scmp.eq.s32.totalorder %s22, 0
      %p194 = por %p192, %p193
      %p195 = scmp.ne.s32.totalorder %s184, %s187
      %p196 = scmp.eq.s32.totalorder %s27, 1
      %p197 = por %p195, %p196
      %p198 = scmp.ne.s32.totalorder %s187, %s188
      %p199 = scmp.eq.s32.totalorder %s27, 0
      %p200 = por %p198, %p199
      %p201 = scmp.ne.s32.totalorder %s187, %s188
      %p202 = scmp.eq.s32.totalorder %s28, 1
      %p203 = por %p201, %p202
      %p205 = scmp.ne.s32.totalorder %s188, %s204
      %p206 = scmp.eq.s32.totalorder %s28, 0
      %p207 = por %p205, %p206
      %s208 = ssub.s32 %s22, %s29
      %p209 = scmp.eq.s32.totalorder %s208, 0
      %s211 = sadd.s32 %s210, 1
      %s212 = scalar_select %p209, %s210, %s211
      %p215 = pneg %p209
      %p216 = scmp.eq.s32.totalorder %s22, 1
      %p217 = por %p215, %p216
      %p218 = scmp.ne.s32.totalorder %s210, %s213
      %p219 = scmp.eq.s32.totalorder %s22, 0
      %p220 = por %p218, %p219
      %p221 = scmp.ne.s32.totalorder %s210, %s213
      %p222 = scmp.eq.s32.totalorder %s27, 1
      %p223 = por %p221, %p222
      %p224 = scmp.ne.s32.totalorder %s213, %s214
      %p225 = scmp.eq.s32.totalorder %s27, 0
      %p226 = por %p224, %p225
      %p227 = scmp.ne.s32.totalorder %s213, %s214
      %p228 = scmp.eq.s32.totalorder %s28, 1
      %p229 = por %p227, %p228
      %p231 = scmp.ne.s32.totalorder %s214, %s230
      %p232 = scmp.eq.s32.totalorder %s28, 0
      %p233 = por %p231, %p232
      %p234 = scmp.le.s32.totalorder 1, %s22
      %p235 = scmp.lt.s32.totalorder %s22, 3
      %p236 = pnand %p234, %p235
      %p237 = pneg %p236
      // Predicated region
      $region9: #{depthconv1d_forward.1} parent=5 // pred_check
        _
      $region10: #{depthconv1d_forward.1} parent=5 // pred_check_branch
        %239 = sbr.rel (%p236) target = $region12
      $region11: #{depthconv1d_forward.1} parent=5 // pred_region
        %s240 = ssub.s32 %s22, 1
        // Predicated region
        $region13: #{depthconv1d_forward.1} parent=11 // pred_check
          %p241 = pneg %p69
        $region14: #{depthconv1d_forward.1} parent=11 // pred_check_branch
          %243 = sbr.rel (%p241) target = $region16
        $region15: #{depthconv1d_forward.1} parent=11 // pred_region
          %s245 = ssub.s32 16, 16
          %246 = vsyncadd [#allocation5], %s245
          %s248 = sshll.u32 %s1, 4
          %s249 = int_to_ptr.vmem [resolvable:$true] %s248
          %251 = dma.vmem_to_smem %s249, 16, [#allocation3], [#allocation5]
        $region16: #{depthconv1d_forward.1} parent=11 // pred_fallthru
          _
        // Predicated region
        $region17: #{depthconv1d_forward.1} parent=11 // pred_check
          %p252 = pneg %p90
        $region18: #{depthconv1d_forward.1} parent=11 // pred_check_branch
          %254 = sbr.rel (%p252) target = $region20
        $region19: #{depthconv1d_forward.1} parent=11 // pred_region
          _
        $region20: #{depthconv1d_forward.1} parent=11 // pred_fallthru
          _
        // Predicated region
        $region21: #{depthconv1d_forward.1} parent=11 // pred_check
          %p255 = pneg %p111
        $region22: #{depthconv1d_forward.1} parent=11 // pred_check_branch
          %257 = sbr.rel (%p255) target = $region24
        $region23: #{depthconv1d_forward.1} parent=11 // pred_region
          _
        $region24: #{depthconv1d_forward.1} parent=11 // pred_fallthru
          _
        // Predicated region
        $region25: #{depthconv1d_forward.1} parent=11 // pred_check
          %p258 = pneg %p132
        $region26: #{depthconv1d_forward.1} parent=11 // pred_check_branch
          %260 = sbr.rel (%p258) target = $region28
        $region27: #{depthconv1d_forward.1} parent=11 // pred_region
          _
        $region28: #{depthconv1d_forward.1} parent=11 // pred_fallthru
          _
        // Predicated region
        $region29: #{depthconv1d_forward.1} parent=11 // pred_check
          %p261 = pneg %p153
        $region30: #{depthconv1d_forward.1} parent=11 // pred_check_branch
          %263 = sbr.rel (%p261) target = $region32
        $region31: #{depthconv1d_forward.1} parent=11 // pred_region
          _
        $region32: #{depthconv1d_forward.1} parent=11 // pred_fallthru
          _
        // Predicated region
        $region33: #{depthconv1d_forward.1} parent=11 // pred_check
          %p264 = pneg %p174
        $region34: #{depthconv1d_forward.1} parent=11 // pred_check_branch
          %266 = sbr.rel (%p264) target = $region36
        $region35: #{depthconv1d_forward.1} parent=11 // pred_region
          _
        $region36: #{depthconv1d_forward.1} parent=11 // pred_fallthru
          _
      $region12: #{depthconv1d_forward.1} parent=5 // pred_fallthru
        _
      %p267 = scmp.lt.s32.totalorder %s22, 2
      // Predicated region
      $region37: #{depthconv1d_forward.1} parent=5 // pred_check
        %p268 = pneg %p267
      $region38: #{depthconv1d_forward.1} parent=5 // pred_check_branch
        %270 = sbr.rel (%p268) target = $region40
      $region39: #{depthconv1d_forward.1} parent=5 // pred_region
        // Predicated region
        $region41: #{depthconv1d_forward.1} parent=39 // pred_check
          %p271 = pneg %p42
        $region42: #{depthconv1d_forward.1} parent=39 // pred_check_branch
          %273 = sbr.rel (%p271) target = $region44
        $region43: #{depthconv1d_forward.1} parent=39 // pred_region
          %p274 = scmp.lt.s32.totalorder %s22, 1
          %s275 = scalar_select %p274, %s22, 1
          %s276 = smul.addr %s275, 2
          %s277 = smul.addr %s276, 4
          %s278 = scalar_lea.vmem %s0, %s277
        $region44: #{depthconv1d_forward.1} parent=39 // pred_fallthru
          _
      $region40: #{depthconv1d_forward.1} parent=5 // pred_fallthru
        _
      %p279 = scmp.le.s32.totalorder 1, %s22
      %p280 = scmp.lt.s32.totalorder %s22, 3
      %p281 = pnand %p279, %p280
      %p282 = pneg %p281
      // Predicated region
      $region45: #{depthconv1d_forward.1} parent=5 // pred_check
        _
      $region46: #{depthconv1d_forward.1} parent=5 // pred_check_branch
        %284 = sbr.rel (%p281) target = $region48
      $region47: #{depthconv1d_forward.1} parent=5 // pred_region
        %s285 = ssub.s32 %s22, 1
        // Predicated region
        $region49: #{depthconv1d_forward.1} parent=47 // pred_check
          %p286 = pneg %p69
        $region50: #{depthconv1d_forward.1} parent=47 // pred_check_branch
          %288 = sbr.rel (%p286) target = $region52
        $region51: #{depthconv1d_forward.1} parent=47 // pred_region
          %289 = dma.done [#allocation5], 16
        $region52: #{depthconv1d_forward.1} parent=47 // pred_fallthru
          _
        %290 = sfence
        %p291 = scmp.lt.s32.totalorder %s27, 1
        %s292 = scalar_select %p291, %s27, 1
        %s293 = smul.addr %s292, 2
        %s294 = smul.addr %s293, 4
        %s295 = scalar_lea.vmem %s0, %s294
        %p296 = pneg %p48
        %p297 = pneg %p45
        %p298 = pneg %p69
        %p299 = pneg %p66
        %p300 = pneg %p90
        %p301 = pneg %p87
        %p302 = pneg %p111
        %p303 = pneg %p108
        %p304 = pneg %p132
        %p305 = pneg %p129
        %p306 = pneg %p153
        %p307 = pneg %p150
        %p308 = pneg %p174
        %p309 = pneg %p171
        %p310 = pneg %p200
        %p311 = pneg %p197
        %s312 = sand.u32 %s187, 1
        %s313 = scalar_lea.sflag [#allocation4], %s312
        %s314 = sand.u32 %s187, 1
        %s315 = smul.addr %s314, 16
        %s316 = scalar_lea.vmem [#allocation6], %s315
        %p317 = pneg %p226
        %p318 = pneg %p223
        %s319 = sand.u32 %s213, 1
        %s320 = scalar_lea.sflag [#allocation8], %s319
        %s321 = sand.u32 %s213, 1
        %s322 = smul.addr %s321, 16
        %s323 = scalar_lea.vmem [#allocation7], %s322
        %p324 = scmp.lt.s32.totalorder %s27, 1
        %s325 = scalar_select %p324, %s27, 1
        %s326 = smul.addr %s325, 2
        %s327 = smul.addr %s326, 4
        %s328 = scalar_lea.vmem %s0, %s327
        %v330 = vld [vmem:[%s328] sm:$0xf]
        %v331 = vld [vmem:[%s328 + $0x4] sm:$0xf]
        %v332 = vld [vmem:[%s3] sm:$0xff]
        %v333 = vld [vmem:[%s3 + $0x8] sm:$0xff]
        %v334 = vld [vmem:[%s3 + $0x10] sm:$0xff]
        %v335 = vld [vmem:[%s3 + $0x18] sm:$0xff]
        %s336 = sld [smem:[#allocation3]]
        %s337 = sld [smem:[#allocation3 + $0x1]]
        %v338 = vld [vmem:[%s2] sm:$0xf]
        %v339 = vld [vmem:[%s2 + $0x4] sm:$0xf]
        %v340 = vld [vmem:[%s2 + $0x8] sm:$0xf]
        %v341 = vld [vmem:[%s2 + $0xc] sm:$0xf]
        %343 = vset.pattern.permute.xlu0 0
        %344 = vperm.xlu0 %343, %v332
        %v345 = vpop.permute.xlu0 %344
        %348 = vset.pattern.permute.xlu0 0
        %349 = vperm.xlu0 %348, %v333
        %v350 = vpop.permute.xlu0 %349
        %353 = vset.pattern.permute.xlu0 0
        %354 = vperm.xlu0 %353, %v334
        %v355 = vpop.permute.xlu0 %354
        %358 = vset.pattern.permute.xlu0 0
        %359 = vperm.xlu0 %358, %v335
        %v360 = vpop.permute.xlu0 %359
        %v366 = vunpack.c.l.b16 %v338
        %v367 = vunpack.c.l.b16 %v339
        %v368 = vunpack.c.l.b16 %v340
        %v369 = vunpack.c.l.b16 %v341
        %v370 = vpack.c.b16 %v367, %v366
        %v371 = vpack.c.b16 %v369, %v368
        %v374 = vunpack.c.l.b16 %v330
        %v375 = vunpack.c.l.b16 %v331
        %v376 = vpack.c.b16 %v375, %v374
        %vm378 = vcmask 130048
        %v380 = vsel %vm378, %v370, 0
        %v383 = vsel %vm378, %v371, 0
        %385 = vmatprep.subr.bf16.mxu0 0
        %386 = vmatpush1.bf16.msra.mxu0 %v376
        %387 = vmatprep.subr.bf16.mxu0 0
        %388 = vmatpush1.bf16.msra.mxu0 0
        %389 = vmatprep.subr.bf16.mxu0 0
        %390 = vmatpush1.bf16.msra.mxu0 0
        %391 = vmatprep.subr.bf16.mxu0 0
        %392 = vmatpush1.bf16.msra.mxu0 0
        %393 = vmatprep.subr.bf16.mxu0 0
        %394 = vmatpush1.bf16.msra.mxu0 0
        %395 = vmatprep.subr.bf16.mxu0 0
        %396 = vmatpush1.bf16.msra.mxu0 0
        %397 = vmatprep.subr.bf16.mxu0 0
        %398 = vmatpush1.bf16.msra.mxu0 0
        %399 = vmatprep.subr.bf16.mxu0 0
        %400 = vmatpush1.bf16.msra.mxu0 0
        %401 = vmatprep.subr.bf16.mxu0 0
        %402 = vmatpush1.bf16.msra.mxu0 0
        %403 = vmatprep.subr.bf16.mxu0 0
        %404 = vmatpush1.bf16.msra.mxu0 0
        %405 = vmatprep.subr.bf16.mxu0 0
        %406 = vmatpush1.bf16.msra.mxu0 0
        %407 = vmatprep.subr.bf16.mxu0 0
        %408 = vmatpush1.bf16.msra.mxu0 0
        %409 = vmatprep.subr.bf16.mxu0 0
        %410 = vmatpush1.bf16.msra.mxu0 0
        %411 = vmatprep.subr.bf16.mxu0 0
        %412 = vmatpush1.bf16.msra.mxu0 0
        %413 = vmatprep.subr.bf16.mxu0 0
        %414 = vmatpush1.bf16.msra.mxu0 0
        %415 = vmatprep.subr.bf16.mxu0 0
        %416 = vmatpush1.bf16.msra.mxu0 0
        %417 = vmatprep.mubr.bf16.mxu0 0
        %418 = vmatmul.mubr.bf16.gmra.mrb[0].mxu0 %v380
        %v419 = vpop.f32.mrb[0].mxu0
        %v420 = vadd.f32 %v345, %v419
        %v421 = vpop.f32.mrb[0].mxu0
        %v422 = vpop.f32.mrb[0].mxu0
        %v423 = vadd.f32 %v350, %v422
        %v424 = vpop.f32.mrb[0].mxu0
        %425 = vmatprep.mubr.bf16.mxu0 0
        %426 = vmatmul.mubr.bf16.gmra.mrb[0].mxu0 %v383
        %v427 = vpop.f32.mrb[0].mxu0
        %v428 = vadd.f32 %v355, %v427
        %v429 = vpop.f32.mrb[0].mxu0
        %v430 = vpop.f32.mrb[0].mxu0
        %v431 = vadd.f32 %v360, %v430
        %v432 = vpop.f32.mrb[0].mxu0
        %433 = vdwg.mxu0
        %vm434 = vcmp.ge.f32.partialorder %v420, 0.0
        %vm435 = vcmp.ge.f32.partialorder %v423, 0.0
        %vm436 = vcmp.ge.f32.partialorder %v428, 0.0
        %vm437 = vcmp.ge.f32.partialorder %v431, 0.0
        %v438 = vstv %s336
        %v439 = vmul.f32 %v438, %v420
        %v440 = vmul.f32 %v438, %v423
        %v441 = vmul.f32 %v438, %v428
        %v442 = vmul.f32 %v438, %v431
        %v443 = vsel %vm434, %v420, %v439
        %v444 = vsel %vm435, %v423, %v440
        %v445 = vsel %vm436, %v428, %v441
        %v446 = vsel %vm437, %v431, %v442
        %v447 = vlaneseq
        %v448 = vand.u32 %v447, 127
        %vm449 = vcmp.lt.s32.totalorder %v448, 32
        %v450 = vsel %vm449, 1, 0
        %vm451 = vcmp.eq.s32.totalorder %v450, 1
        %v452 = vsel %vm451, %v443, 0.0
        %v453 = vsel %vm451, %v444, 0.0
        %v454 = vsel %vm451, %v445, 0.0
        %v455 = vsel %vm451, %v446, 0.0
        %v456 = vadd.f32 %v452, %v453
        %v457 = vadd.f32 %v456, %v454
        %v458 = vadd.f32 %v457, %v455
        %459 = vadd.xlane.f32.xlu0 %v458
        %v460 = vpop.xlane.xlu0 %459
        %v461 = vrot.slane %v460, 4
        %v462 = vadd.f32 %v460, %v461
        %v463 = vrot.slane %v462, 2
        %v464 = vadd.f32 %v462, %v463
        %v465 = vrot.slane %v464, 1
        %v466 = vadd.f32 %v464, %v465
        %s467 = vtos %v466
        %v468 = vstv %s467
        %v469 = vmul.f32 %v468, 0.0009765625
        %v470 = vmul.f32 %v452, %v452
        %v471 = vmul.f32 %v453, %v453
        %v472 = vmul.f32 %v454, %v454
        %v473 = vmul.f32 %v455, %v455
        %v474 = vadd.f32 %v470, %v471
        %v475 = vadd.f32 %v474, %v472
        %v476 = vadd.f32 %v475, %v473
        %477 = vadd.xlane.f32.xlu0 %v476
        %v478 = vpop.xlane.xlu0 %477
        %v479 = vrot.slane %v478, 4
        %v480 = vadd.f32 %v478, %v479
        %v481 = vrot.slane %v480, 2
        %v482 = vadd.f32 %v480, %v481
        %v483 = vrot.slane %v482, 1
        %v484 = vadd.f32 %v482, %v483
        %s485 = vtos %v484
        %v486 = vstv %s485
        %v487 = vmul.f32 %v486, 0.0009765625
        %v488 = vmul.f32 %v469, %v469
        %v489 = vsub.f32 %v487, %v488
        %v490 = vmax.f32 %v489, 0.0
        %v491 = vsub.f32 %v443, %v469
        %v492 = vsub.f32 %v444, %v469
        %v493 = vsub.f32 %v445, %v469
        %v494 = vsub.f32 %v446, %v469
        %v495 = vadd.f32 %v490, 1e-08
        %v496 = vrsqrt.pop %v495
        %v497 = vmul.f32 %v491, %v496
        %v498 = vmul.f32 %v492, %v496
        %v499 = vmul.f32 %v493, %v496
        %v500 = vmul.f32 %v494, %v496
        %501 = vset.pattern.permute.xlu0 1
        %502 = vperm.xlu0 %501, %v332
        %v503 = vpop.permute.xlu0 %502
        %505 = vset.pattern.permute.xlu0 1
        %506 = vperm.xlu0 %505, %v333
        %v507 = vpop.permute.xlu0 %506
        %509 = vset.pattern.permute.xlu0 1
        %510 = vperm.xlu0 %509, %v334
        %v511 = vpop.permute.xlu0 %510
        %513 = vset.pattern.permute.xlu0 1
        %514 = vperm.xlu0 %513, %v335
        %v515 = vpop.permute.xlu0 %514
        %v517 = vmul.f32 %v497, %v503
        %v518 = vmul.f32 %v498, %v507
        %v519 = vmul.f32 %v499, %v511
        %v520 = vmul.f32 %v500, %v515
        %521 = vset.pattern.permute.xlu0 2
        %522 = vperm.xlu0 %521, %v332
        %v523 = vpop.permute.xlu0 %522
        %525 = vset.pattern.permute.xlu0 2
        %526 = vperm.xlu0 %525, %v333
        %v527 = vpop.permute.xlu0 %526
        %529 = vset.pattern.permute.xlu0 2
        %530 = vperm.xlu0 %529, %v334
        %v531 = vpop.permute.xlu0 %530
        %533 = vset.pattern.permute.xlu0 2
        %534 = vperm.xlu0 %533, %v335
        %v535 = vpop.permute.xlu0 %534
        %v537 = vadd.f32 %v517, %v523
        %v538 = vadd.f32 %v518, %v527
        %v539 = vadd.f32 %v519, %v531
        %v540 = vadd.f32 %v520, %v535
        %v541 = vsel %vm451, %v537, 0.0
        %v542 = vsel %vm451, %v538, 0.0
        %v543 = vsel %vm451, %v539, 0.0
        %v544 = vsel %vm451, %v540, 0.0
        %vm545 = vcmask 15360
        %546 = vst.msk [vmem:[#allocation2] sm:$0xff] %vm545, 0.0
        %547 = vst.msk [vmem:[#allocation2 + $0x10] sm:$0xff] %vm545, 0.0
        %548 = vst.msk [vmem:[#allocation2 + $0x20] sm:$0xff] %vm545, 0.0
        %549 = vst.msk [vmem:[#allocation2 + $0x30] sm:$0xff] %vm545, 0.0
        %vm550 = vcmask 31760
        %551 = vst.msk [vmem:[#allocation2 + $0x8] sm:$0xff] %vm550, 0.0
        %552 = vst.msk [vmem:[#allocation2 + $0x18] sm:$0xff] %vm550, 0.0
        %553 = vst.msk [vmem:[#allocation2 + $0x28] sm:$0xff] %vm550, 0.0
        %554 = vst.msk [vmem:[#allocation2 + $0x38] sm:$0xff] %vm550, 0.0
        %559 = vrot.lane.b32.xlu0 %v541, 2
        %v560 = vpop.permute.xlu0 %559
        %561 = vrot.lane.b32.xlu0 %v542, 2
        %v562 = vpop.permute.xlu0 %561
        %563 = vrot.lane.b32.xlu0 %v543, 2
        %v564 = vpop.permute.xlu0 %563
        %565 = vrot.lane.b32.xlu0 %v544, 2
        %v566 = vpop.permute.xlu0 %565
        %vm571 = vcmask 1047568
        %572 = vst.msk [vmem:[#allocation2] sm:$0xff] %vm571, %v560
        %573 = vst.msk [vmem:[#allocation2 + $0x8] sm:$0xff] %vm545, %v560
        %574 = vst.msk [vmem:[#allocation2 + $0x10] sm:$0xff] %vm571, %v562
        %575 = vst.msk [vmem:[#allocation2 + $0x18] sm:$0xff] %vm545, %v562
        %576 = vst.msk [vmem:[#allocation2 + $0x20] sm:$0xff] %vm571, %v564
        %577 = vst.msk [vmem:[#allocation2 + $0x28] sm:$0xff] %vm545, %v564
        %578 = vst.msk [vmem:[#allocation2 + $0x30] sm:$0xff] %vm571, %v566
        %579 = vst.msk [vmem:[#allocation2 + $0x38] sm:$0xff] %vm545, %v566
        %v580 = vld [vmem:[%s4] sm:$0xff]
        %v581 = vld [vmem:[%s4 + $0x8] sm:$0xff]
        %v582 = vld [vmem:[%s4 + $0x10] sm:$0xff]
        %v583 = vld [vmem:[%s4 + $0x18] sm:$0xff]
        %v584 = vld [vmem:[#allocation2] sm:$0xff]
        %v585 = vld [vmem:[#allocation2 + $0x10] sm:$0xff]
        %v586 = vld [vmem:[#allocation2 + $0x20] sm:$0xff]
        %v587 = vld [vmem:[#allocation2 + $0x30] sm:$0xff]
        %589 = vset.pattern.permute.xlu0 0
        %590 = vperm.xlu0 %589, %v580
        %v591 = vpop.permute.xlu0 %590
        %594 = vset.pattern.permute.xlu0 0
        %595 = vperm.xlu0 %594, %v581
        %v596 = vpop.permute.xlu0 %595
        %599 = vset.pattern.permute.xlu0 0
        %600 = vperm.xlu0 %599, %v582
        %v601 = vpop.permute.xlu0 %600
        %604 = vset.pattern.permute.xlu0 0
        %605 = vperm.xlu0 %604, %v583
        %v606 = vpop.permute.xlu0 %605
        %v608 = vmul.f32 %v591, %v584
        %v609 = vmul.f32 %v596, %v585
        %v610 = vmul.f32 %v601, %v586
        %v611 = vmul.f32 %v606, %v587
        %v612 = vld [vmem:[#allocation2] sm:$0xff]
        %v613 = vld [vmem:[#allocation2 + $0x8] sm:$0xff]
        %v614 = vld [vmem:[#allocation2 + $0x10] sm:$0xff]
        %v615 = vld [vmem:[#allocation2 + $0x18] sm:$0xff]
        %v616 = vld [vmem:[#allocation2 + $0x20] sm:$0xff]
        %v617 = vld [vmem:[#allocation2 + $0x28] sm:$0xff]
        %v618 = vld [vmem:[#allocation2 + $0x30] sm:$0xff]
        %v619 = vld [vmem:[#allocation2 + $0x38] sm:$0xff]
        %620 = vset.pattern.permute.xlu0 1
        %621 = vperm.xlu0 %620, %v580
        %v622 = vpop.permute.xlu0 %621
        %624 = vset.pattern.permute.xlu0 1
        %625 = vperm.xlu0 %624, %v581
        %v626 = vpop.permute.xlu0 %625
        %628 = vset.pattern.permute.xlu0 1
        %629 = vperm.xlu0 %628, %v582
        %v630 = vpop.permute.xlu0 %629
        %632 = vset.pattern.permute.xlu0 1
        %633 = vperm.xlu0 %632, %v583
        %v634 = vpop.permute.xlu0 %633
        %v636 = vmul.f32 %v622, %v612
        %v637 = vmul.f32 %v622, %v613
        %v638 = vmul.f32 %v626, %v614
        %v639 = vmul.f32 %v626, %v615
        %v640 = vmul.f32 %v630, %v616
        %v641 = vmul.f32 %v630, %v617
        %v642 = vmul.f32 %v634, %v618
        %v643 = vmul.f32 %v634, %v619
        %652 = vrot.lane.b32.xlu0 %v636, 126
        %v653 = vpop.permute.xlu0 %652
        %654 = vrot.lane.b32.xlu0 %v637, 126
        %v655 = vpop.permute.xlu0 %654
        %656 = vrot.lane.b32.xlu0 %v638, 126
        %v657 = vpop.permute.xlu0 %656
        %658 = vrot.lane.b32.xlu0 %v639, 126
        %v659 = vpop.permute.xlu0 %658
        %660 = vrot.lane.b32.xlu0 %v640, 126
        %v661 = vpop.permute.xlu0 %660
        %662 = vrot.lane.b32.xlu0 %v641, 126
        %v663 = vpop.permute.xlu0 %662
        %664 = vrot.lane.b32.xlu0 %v642, 126
        %v665 = vpop.permute.xlu0 %664
        %666 = vrot.lane.b32.xlu0 %v643, 126
        %v667 = vpop.permute.xlu0 %666
        %vm668 = vcmask 1031168
        %v669 = vsel %vm668, %v653, %v655
        %v670 = vsel %vm668, %v657, %v659
        %v671 = vsel %vm668, %v661, %v663
        %v672 = vsel %vm668, %v665, %v667
        %v677 = vadd.f32 %v608, %v669
        %v678 = vadd.f32 %v609, %v670
        %v679 = vadd.f32 %v610, %v671
        %v680 = vadd.f32 %v611, %v672
        %681 = vset.pattern.permute.xlu0 2
        %682 = vperm.xlu0 %681, %v580
        %v683 = vpop.permute.xlu0 %682
        %685 = vset.pattern.permute.xlu0 2
        %686 = vperm.xlu0 %685, %v581
        %v687 = vpop.permute.xlu0 %686
        %689 = vset.pattern.permute.xlu0 2
        %690 = vperm.xlu0 %689, %v582
        %v691 = vpop.permute.xlu0 %690
        %693 = vset.pattern.permute.xlu0 2
        %694 = vperm.xlu0 %693, %v583
        %v695 = vpop.permute.xlu0 %694
        %v697 = vmul.f32 %v683, %v612
        %v698 = vmul.f32 %v683, %v613
        %v699 = vmul.f32 %v687, %v614
        %v700 = vmul.f32 %v687, %v615
        %v701 = vmul.f32 %v691, %v616
        %v702 = vmul.f32 %v691, %v617
        %v703 = vmul.f32 %v695, %v618
        %v704 = vmul.f32 %v695, %v619
        %713 = vrot.lane.b32.xlu0 %v697, 124
        %v714 = vpop.permute.xlu0 %713
        %715 = vrot.lane.b32.xlu0 %v698, 124
        %v716 = vpop.permute.xlu0 %715
        %717 = vrot.lane.b32.xlu0 %v699, 124
        %v718 = vpop.permute.xlu0 %717
        %719 = vrot.lane.b32.xlu0 %v700, 124
        %v720 = vpop.permute.xlu0 %719
        %721 = vrot.lane.b32.xlu0 %v701, 124
        %v722 = vpop.permute.xlu0 %721
        %723 = vrot.lane.b32.xlu0 %v702, 124
        %v724 = vpop.permute.xlu0 %723
        %725 = vrot.lane.b32.xlu0 %v703, 124
        %v726 = vpop.permute.xlu0 %725
        %727 = vrot.lane.b32.xlu0 %v704, 124
        %v728 = vpop.permute.xlu0 %727
        %vm729 = vcmask 1014784
        %v730 = vsel %vm729, %v714, %v716
        %v731 = vsel %vm729, %v718, %v720
        %v732 = vsel %vm729, %v722, %v724
        %v733 = vsel %vm729, %v726, %v728
        %v738 = vadd.f32 %v677, %v730
        %v739 = vadd.f32 %v678, %v731
        %v740 = vadd.f32 %v679, %v732
        %v741 = vadd.f32 %v680, %v733
        %742 = vset.pattern.permute.xlu0 3
        %743 = vperm.xlu0 %742, %v332
        %v744 = vpop.permute.xlu0 %743
        %746 = vset.pattern.permute.xlu0 3
        %747 = vperm.xlu0 %746, %v333
        %v748 = vpop.permute.xlu0 %747
        %750 = vset.pattern.permute.xlu0 3
        %751 = vperm.xlu0 %750, %v334
        %v752 = vpop.permute.xlu0 %751
        %754 = vset.pattern.permute.xlu0 3
        %755 = vperm.xlu0 %754, %v335
        %v756 = vpop.permute.xlu0 %755
        %v758 = vadd.f32 %v738, %v744
        %v759 = vadd.f32 %v739, %v748
        %v760 = vadd.f32 %v740, %v752
        %v761 = vadd.f32 %v741, %v756
        %vm762 = vcmp.ge.f32.partialorder %v758, 0.0
        %vm763 = vcmp.ge.f32.partialorder %v759, 0.0
        %vm764 = vcmp.ge.f32.partialorder %v760, 0.0
        %vm765 = vcmp.ge.f32.partialorder %v761, 0.0
        %v766 = vstv %s337
        %v767 = vmul.f32 %v766, %v758
        %v768 = vmul.f32 %v766, %v759
        %v769 = vmul.f32 %v766, %v760
        %v770 = vmul.f32 %v766, %v761
        %v771 = vsel %vm762, %v758, %v767
        %v772 = vsel %vm763, %v759, %v768
        %v773 = vsel %vm764, %v760, %v769
        %v774 = vsel %vm765, %v761, %v770
        %v775 = vsel %vm451, %v771, 0.0
        %v776 = vsel %vm451, %v772, 0.0
        %v777 = vsel %vm451, %v773, 0.0
        %v778 = vsel %vm451, %v774, 0.0
        %v779 = vadd.f32 %v775, %v776
        %v780 = vadd.f32 %v779, %v777
        %v781 = vadd.f32 %v780, %v778
        %782 = vadd.xlane.f32.xlu0 %v781
        %v783 = vpop.xlane.xlu0 %782
        %v784 = vrot.slane %v783, 4
        %v785 = vadd.f32 %v783, %v784
        %v786 = vrot.slane %v785, 2
        %v787 = vadd.f32 %v785, %v786
        %v788 = vrot.slane %v787, 1
        %v789 = vadd.f32 %v787, %v788
        %s790 = vtos %v789
        %v791 = vstv %s790
        %v792 = vmul.f32 %v791, 0.0009765625
        %v793 = vmul.f32 %v775, %v775
        %v794 = vmul.f32 %v776, %v776
        %v795 = vmul.f32 %v777, %v777
        %v796 = vmul.f32 %v778, %v778
        %v797 = vadd.f32 %v793, %v794
        %v798 = vadd.f32 %v797, %v795
        %v799 = vadd.f32 %v798, %v796
        %800 = vadd.xlane.f32.xlu0 %v799
        %v801 = vpop.xlane.xlu0 %800
        %v802 = vrot.slane %v801, 4
        %v803 = vadd.f32 %v801, %v802
        %v804 = vrot.slane %v803, 2
        %v805 = vadd.f32 %v803, %v804
        %v806 = vrot.slane %v805, 1
        %v807 = vadd.f32 %v805, %v806
        %s808 = vtos %v807
        %v809 = vstv %s808
        %v810 = vmul.f32 %v809, 0.0009765625
        %v811 = vmul.f32 %v792, %v792
        %v812 = vsub.f32 %v810, %v811
        %v813 = vmax.f32 %v812, 0.0
        %v814 = vsub.f32 %v771, %v792
        %v815 = vsub.f32 %v772, %v792
        %v816 = vsub.f32 %v773, %v792
        %v817 = vsub.f32 %v774, %v792
        %v818 = vadd.f32 %v813, 1e-08
        %v819 = vrsqrt.pop %v818
        %v820 = vmul.f32 %v814, %v819
        %v821 = vmul.f32 %v815, %v819
        %v822 = vmul.f32 %v816, %v819
        %v823 = vmul.f32 %v817, %v819
        %v824 = vld [vmem:[%s5] sm:$0xf]
        %v825 = vld [vmem:[%s5 + $0x4] sm:$0xf]
        %v826 = vld [vmem:[%s5 + $0x8] sm:$0xf]
        %v827 = vld [vmem:[%s5 + $0xc] sm:$0xf]
        %v828 = vpack.c.bf16 %v821, %v820
        %v829 = vpack.c.bf16 %v823, %v822
        %v830 = vld [vmem:[%s6] sm:$0xff]
        %v831 = vld [vmem:[%s6 + $0x8] sm:$0xff]
        %v832 = vld [vmem:[%s6 + $0x10] sm:$0xff]
        %v833 = vld [vmem:[%s6 + $0x18] sm:$0xff]
        %835 = vset.pattern.permute.xlu0 0
        %836 = vperm.xlu0 %835, %v830
        %v837 = vpop.permute.xlu0 %836
        %840 = vset.pattern.permute.xlu0 0
        %841 = vperm.xlu0 %840, %v831
        %v842 = vpop.permute.xlu0 %841
        %845 = vset.pattern.permute.xlu0 0
        %846 = vperm.xlu0 %845, %v832
        %v847 = vpop.permute.xlu0 %846
        %850 = vset.pattern.permute.xlu0 0
        %851 = vperm.xlu0 %850, %v833
        %v852 = vpop.permute.xlu0 %851
        %v858 = vunpack.c.l.b16 %v824
        %v859 = vunpack.c.l.b16 %v825
        %v860 = vunpack.c.l.b16 %v826
        %v861 = vunpack.c.l.b16 %v827
        %v862 = vpack.c.b16 %v859, %v858
        %v863 = vpack.c.b16 %v861, %v860
        %vm864 = vcmask 261120
        %v866 = vsel %vm864, %v862, 0
        %v869 = vsel %vm864, %v863, 0
        %871 = vmatprep.subr.bf16.mxu0 0
        %872 = vmatpush1.bf16.msra.mxu0 %v828
        %873 = vmatprep.subr.bf16.mxu0 0
        %874 = vmatpush1.bf16.msra.mxu0 %v829
        %875 = vmatprep.subr.bf16.mxu0 0
        %876 = vmatpush1.bf16.msra.mxu0 0
        %877 = vmatprep.subr.bf16.mxu0 0
        %878 = vmatpush1.bf16.msra.mxu0 0
        %879 = vmatprep.subr.bf16.mxu0 0
        %880 = vmatpush1.bf16.msra.mxu0 0
        %881 = vmatprep.subr.bf16.mxu0 0
        %882 = vmatpush1.bf16.msra.mxu0 0
        %883 = vmatprep.subr.bf16.mxu0 0
        %884 = vmatpush1.bf16.msra.mxu0 0
        %885 = vmatprep.subr.bf16.mxu0 0
        %886 = vmatpush1.bf16.msra.mxu0 0
        %887 = vmatprep.subr.bf16.mxu0 0
        %888 = vmatpush1.bf16.msra.mxu0 0
        %889 = vmatprep.subr.bf16.mxu0 0
        %890 = vmatpush1.bf16.msra.mxu0 0
        %891 = vmatprep.subr.bf16.mxu0 0
        %892 = vmatpush1.bf16.msra.mxu0 0
        %893 = vmatprep.subr.bf16.mxu0 0
        %894 = vmatpush1.bf16.msra.mxu0 0
        %895 = vmatprep.subr.bf16.mxu0 0
        %896 = vmatpush1.bf16.msra.mxu0 0
        %897 = vmatprep.subr.bf16.mxu0 0
        %898 = vmatpush1.bf16.msra.mxu0 0
        %899 = vmatprep.subr.bf16.mxu0 0
        %900 = vmatpush1.bf16.msra.mxu0 0
        %901 = vmatprep.subr.bf16.mxu0 0
        %902 = vmatpush1.bf16.msra.mxu0 0
        %903 = vmatprep.mubr.bf16.mxu0 0
        %904 = vmatmul.mubr.bf16.gmra.mrb[0].mxu0 %v866
        %v905 = vpop.f32.mrb[0].mxu0
        %v906 = vadd.f32 %v837, %v905
        %v907 = vpop.f32.mrb[0].mxu0
        %v908 = vpop.f32.mrb[0].mxu0
        %v909 = vadd.f32 %v842, %v908
        %v910 = vpop.f32.mrb[0].mxu0
        %911 = vmatprep.mubr.bf16.mxu0 0
        %912 = vmatmul.mubr.bf16.gmra.mrb[0].mxu0 %v869
        %v913 = vpop.f32.mrb[0].mxu0
        %v914 = vadd.f32 %v847, %v913
        %v915 = vpop.f32.mrb[0].mxu0
        %v916 = vpop.f32.mrb[0].mxu0
        %v917 = vadd.f32 %v852, %v916
        %v918 = vpop.f32.mrb[0].mxu0
        %919 = vdwg.mxu0
        %920 = vst [vmem:[%s316] sm:$0xff] %v906
        %921 = vst [vmem:[%s316 + $0x8] sm:$0xff] %v909
        %922 = vst [vmem:[%s323] sm:$0xff] %v914
        %923 = vst [vmem:[%s323 + $0x8] sm:$0xff] %v917
        %s924 = sand.u32 %s187, 1
        %s925 = scalar_lea.sflag [#allocation4], %s924
        %s926 = sand.u32 %s187, 1
        %s927 = smul.addr %s926, 16
        %s928 = scalar_lea.vmem [#allocation6], %s927
        %s929 = sand.u32 %s213, 1
        %s930 = scalar_lea.sflag [#allocation8], %s929
        %s931 = sand.u32 %s213, 1
        %s932 = smul.addr %s931, 16
        %s933 = scalar_lea.vmem [#allocation7], %s932
        // Predicated region
        $region53: #{depthconv1d_forward.1} parent=47 // pred_check
          %p934 = pneg %p197
        $region54: #{depthconv1d_forward.1} parent=47 // pred_check_branch
          %936 = sbr.rel (%p934) target = $region56
        $region55: #{depthconv1d_forward.1} parent=47 // pred_region
          %s938 = ssub.s32 256, 256
          %939 = vsyncadd %s925, %s938
          %s940 = smul.addr %s27, 2
          %s941 = smul.addr %s940, 128
          %s942 = scalar_lea.hbm %s7, %s941
          %s943 = sshll.u32 %s928, 4
          %s944 = int_to_ptr.vmem [resolvable:$true] %s943
          %949 = dma.vmem_to_hbm [thread:$0]  %s944, 256, %s942, %s925, 128, 128, 8
        $region56: #{depthconv1d_forward.1} parent=47 // pred_fallthru
          _
        // Predicated region
        $region57: #{depthconv1d_forward.1} parent=47 // pred_check
          %p950 = pneg %p223
        $region58: #{depthconv1d_forward.1} parent=47 // pred_check_branch
          %952 = sbr.rel (%p950) target = $region60
        $region59: #{depthconv1d_forward.1} parent=47 // pred_region
          %s954 = ssub.s32 256, 256
          %955 = vsyncadd %s930, %s954
          %s956 = smul.addr %s27, 2
          %s957 = smul.addr %s956, 128
          %s958 = scalar_lea.hbm %s8, %s957
          %s959 = sshll.u32 %s933, 4
          %s960 = int_to_ptr.vmem [resolvable:$true] %s959
          %965 = dma.vmem_to_hbm [thread:$0]  %s960, 256, %s958, %s930, 128, 128, 8
        $region60: #{depthconv1d_forward.1} parent=47 // pred_fallthru
          _
      $region48: #{depthconv1d_forward.1} parent=5 // pred_fallthru
        _
      %p966 = scmp.le.s32.totalorder 2, %s22
      // Predicated region
      $region61: #{depthconv1d_forward.1} parent=5 // pred_check
        %p967 = pneg %p966
      $region62: #{depthconv1d_forward.1} parent=5 // pred_check_branch
        %969 = sbr.rel (%p967) target = $region64
      $region63: #{depthconv1d_forward.1} parent=5 // pred_region
        %s970 = ssub.s32 %s22, 2
        // Predicated region
        $region65: #{depthconv1d_forward.1} parent=63 // pred_check
          %p971 = pneg %p203
        $region66: #{depthconv1d_forward.1} parent=63 // pred_check_branch
          %973 = sbr.rel (%p971) target = $region68
        $region67: #{depthconv1d_forward.1} parent=63 // pred_region
          %s974 = sand.u32 %s188, 1
          %s975 = scalar_lea.sflag [#allocation4], %s974
          %s976 = sand.u32 %s188, 1
          %s977 = smul.addr %s976, 16
          %s978 = scalar_lea.vmem [#allocation6], %s977
          %979 = dma.done %s975, 256
        $region68: #{depthconv1d_forward.1} parent=63 // pred_fallthru
          _
        // Predicated region
        $region69: #{depthconv1d_forward.1} parent=63 // pred_check
          %p980 = pneg %p229
        $region70: #{depthconv1d_forward.1} parent=63 // pred_check_branch
          %982 = sbr.rel (%p980) target = $region72
        $region71: #{depthconv1d_forward.1} parent=63 // pred_region
          %s983 = sand.u32 %s214, 1
          %s984 = scalar_lea.sflag [#allocation8], %s983
          %s985 = sand.u32 %s214, 1
          %s986 = smul.addr %s985, 16
          %s987 = scalar_lea.vmem [#allocation7], %s986
          %988 = dma.done %s984, 256
        $region72: #{depthconv1d_forward.1} parent=63 // pred_fallthru
          _
      $region64: #{depthconv1d_forward.1} parent=5 // pred_fallthru
        _
    $region6: #{depthconv1d_forward.1} parent=1 // loop_footer
      %s26 = sadd.s32 1, %s22
    $region7: #{depthconv1d_forward.1} parent=1 // loop_footer_branch
      %21 = sbr.rel target = $region3
    $region8: #{depthconv1d_forward.1} parent=1 // loop_exit
      _
    %989 = vsyncpa [#allocation4], 1
    %s990 = scalar_lea.sflag [#allocation4], 1
    %991 = vsyncpa %s990, 1
    %992 = vsyncpa [#allocation8], 1
    %s993 = scalar_lea.sflag [#allocation8], 1
    %994 = vsyncpa %s993, 1
    %995 = vsyncpa [#allocation5], 1
    %s996 = scalar_lea.sflag [#allocation5], 1
    %997 = vsyncpa %s996, 1

</llo_original>
